<compile_context>
chip_gen: v5e
topology: v5e:2x2
jax: 0.10.0
libtpu: 0.0.40
codegen_flags: <defaults>
</compile_context>

<pallas_src>
import functools

import jax
import jax.numpy as jnp
from jax.experimental import pallas as pl
from jax.experimental.pallas import tpu as pltpu


def _round_up(v: int, m: int) -> int:
    return ((v + m - 1) // m) * m


def _pick_tile(n_pad: int, cap: int) -> int:
    """Largest multiple of 128 <= cap that divides n_pad (n_pad is a multiple of 128)."""
    t = max(128, (min(cap, n_pad) // 128) * 128)
    while n_pad % t:
        t -= 128
    return t


# --------------------------------------------------------------------------------------
# Kernels
# --------------------------------------------------------------------------------------
def _embed_kernel(x_ref, w_ref, b_ref, hf_ref, hb_ref):
    # h = x @ W_emb + b_emb ; emit both f32 (GRU/residual) and bf16 (aggregation) copies.
    h = jnp.dot(x_ref[...], w_ref[...], preferred_element_type=jnp.float32) + b_ref[...]
    hf_ref[...] = h
    hb_ref[...] = h.astype(jnp.bfloat16)


def _layer_kernel(nnz_ref, adj_ref, hsrc_ref, hdst_ref, wcomb_ref, whh_ref,
                  bih_ref, bhh_ref, *rest, hpad: int, nclass: int, fuse_head: bool):
    """One K-tiled GatedGraphConv aggregation + shared GRUCell update (epilogue).

    grid = (dst_tile i [parallel], src_tile k [arbitrary]).
    If fuse_head: the residual + MLP + masked log_softmax head runs in the epilogue.
    """
    f32, bf16 = jnp.float32, jnp.bfloat16
    if fuse_head:
        h0_ref, wmlp_ref, bmlp_ref, out_ref, acc_ref = rest
    else:
        hf_out_ref, hb_out_ref, acc_ref = rest

    i = pl.program_id(0)
    k = pl.program_id(1)

    @pl.when(k == 0)
    def _():
        acc_ref[...] = jnp.zeros_like(acc_ref)

    # Aggregation partial sum: acc += A[i-tile, k-tile] @ h_bf16[k-tile]   (bf16 MXU, f32 acc)
    # Skipped entirely for all-zero adjacency blocks (scalar-prefetched nnz flags).
    @pl.when(nnz_ref[i, k] > 0)
    def _():
        acc_ref[...] += jnp.dot(adj_ref[...], hsrc_ref[...],
                                preferred_element_type=f32)

    @pl.when(k == pl.num_programs(1) - 1)
    def _():
        h_t = hdst_ref[...]                                              # [tile, H] f32
        # gi = (A@h) @ (W_conv @ W_ih) + b_ih   (W_conv folded into W_ih in the wrapper)
        gi = jnp.dot(acc_ref[...].astype(bf16), wcomb_ref[...],
                     preferred_element_type=f32) + bih_ref[...]          # [tile, 3H]
        gh = jnp.dot(h_t.astype(bf16), whh_ref[...],
                     preferred_element_type=f32) + bhh_ref[...]          # [tile, 3H]

        r = jax.nn.sigmoid(gi[:, :hpad] + gh[:, :hpad])
        z = jax.nn.sigmoid(gi[:, hpad:2 * hpad] + gh[:, hpad:2 * hpad])
        n = jnp.tanh(gi[:, 2 * hpad:] + r * gh[:, 2 * hpad:])
        h_new = (1.0 - z) * n + z * h_t                                  # [tile, H] f32

        if fuse_head:
            # residual + MLP + masked log_softmax (norm=None, dropout=0 eval -> identity)
            h_res = h0_ref[...] + h_new
            logits = jnp.dot(h_res.astype(bf16), wmlp_ref[...],
                             preferred_element_type=f32) + bmlp_ref[...]  # [tile, Cp]
            col = jax.lax.broadcasted_iota(jnp.int32, logits.shape, 1)
            logits = jnp.where(col < nclass, logits, -1e30)
            mx = jnp.max(logits, axis=1, keepdims=True)
            shifted = logits - mx
            lse = jnp.log(jnp.sum(jnp.exp(shifted), axis=1, keepdims=True))
            out_ref[...] = shifted - lse
        else:
            hf_out_ref[...] = h_new
            hb_out_ref[...] = h_new.astype(bf16)


# --------------------------------------------------------------------------------------
# Wrapper
# --------------------------------------------------------------------------------------
def gated_gnn_forward(x, adj, params, *, nlayers: int):
    """Full GatedGNN forward with K-tiled, nnz-gated adjacency streaming."""
    assert nlayers >= 1
    N, nfeat = x.shape
    nhid = params["w_emb"].shape[1]
    nclass = params["w_mlp"].shape[1]

    H = _round_up(nhid, 128)             # padded hidden (lane) dim
    Fp = _round_up(nfeat, 128)           # padded input feature dim
    Cp = _round_up(nclass, 128)          # padded class dim (lane-dense output store)
    n_pad = _round_up(N, 128)
    tile_n = _pick_tile(n_pad, 256)      # dst-row tile (cap 256: v7x-safe with K-tiling)
    tile_k = _pick_tile(n_pad, 512)      # src (reduction) tile
    n_dst = n_pad // tile_n
    n_src = n_pad // tile_k

    f32, bf16 = jnp.float32, jnp.bfloat16

    def pad2(w, r, c):
        return jnp.zeros((r, c), w.dtype).at[: w.shape[0], : w.shape[1]].set(w)

    # ---- pad / cast inputs & weights (zero padding keeps the math exact) ----
    xp = jnp.zeros((n_pad, Fp), f32).at[:N, :nfeat].set(x).astype(bf16)
    # Adjacency built directly in bf16 (no transient O(N^2) f32 intermediate).
    adjp = jnp.zeros((n_pad, n_pad), bf16).at[:N, :N].set(adj.astype(bf16))
    # Per-(dst-block, src-block) non-zero flags for the scalar-prefetched sparse skip.
    nnz = jnp.any((adjp != 0).reshape(n_dst, tile_n, n_src, tile_k),
                  axis=(1, 3)).astype(jnp.int32)

    w_emb = pad2(params["w_emb"], Fp, H).astype(bf16)
    b_emb = pad2(params["b_emb"], 1, H)                                   # f32
    # Fused GRU gate weights/biases, gate order (r | z | n) along the output axis.
    w_ih_f32 = jnp.concatenate([pad2(params["w_ih"][g], H, H) for g in range(3)], axis=1)
    w_hh = jnp.concatenate([pad2(params["w_hh"][g], H, H) for g in range(3)], axis=1).astype(bf16)
    b_ih = jnp.concatenate([pad2(params["b_ih"][g], 1, H) for g in range(3)], axis=1)  # f32
    b_hh = jnp.concatenate([pad2(params["b_hh"][g], 1, H) for g in range(3)], axis=1)  # f32
    # Fold W_conv into W_ih: gi = (A@h) @ (W_conv @ W_ih) + b_ih   (f32 prefusion, bf16 MXU)
    w_comb = jnp.stack([pad2(params["w_conv"][l], H, H) @ w_ih_f32
                        for l in range(nlayers)]).astype(bf16)            # [L, H, 3H]
    w_mlp = pad2(params["w_mlp"], H, Cp).astype(bf16)
    b_mlp = pad2(params["b_mlp"], 1, Cp)                                   # f32

    # ---- generation-aware VMEM limit (leave ~32 MiB headroom below physical) ----
    try:
        cap = getattr(pltpu.get_tpu_info(), "vmem_capacity_bytes", None) or (64 << 20)
    except Exception:
        cap = 64 << 20
    vmem_limit = max(32 << 20, min(cap - (32 << 20), 100 << 20))
    cp_embed = pltpu.CompilerParams(dimension_semantics=("parallel",),
                                    vmem_limit_bytes=vmem_limit)
    cp_layer = pltpu.CompilerParams(dimension_semantics=("parallel", "arbitrary"),
                                    vmem_limit_bytes=vmem_limit)

    # ---- embedding_h : emits f32 (GRU/residual) and bf16 (aggregation) copies ----
    h0_f, h0_b = pl.pallas_call(
        _embed_kernel,
        out_shape=(jax.ShapeDtypeStruct((n_pad, H), f32),
                   jax.ShapeDtypeStruct((n_pad, H), bf16)),
        grid_spec=pltpu.PrefetchScalarGridSpec(
            num_scalar_prefetch=0, grid=(n_dst,),
            in_specs=[
                pl.BlockSpec((tile_n, Fp), lambda i: (i, 0)),
                pl.BlockSpec((Fp, H), lambda i: (0, 0)),
                pl.BlockSpec((1, H), lambda i: (0, 0)),
            ],
            out_specs=(pl.BlockSpec((tile_n, H), lambda i: (i, 0)),
                       pl.BlockSpec((tile_n, H), lambda i: (i, 0)))),
        compiler_params=cp_embed,
    )(xp, w_emb, b_emb)

    # Shared in_specs for the layer kernels (index_maps get the nnz SMEM ref last).
    base_specs = [
        pl.BlockSpec((tile_n, tile_k), lambda i, k, nnz: (i, k)),   # adj dst/src block
        pl.BlockSpec((tile_k, H), lambda i, k, nnz: (k, 0)),        # h (bf16, src K-tile)
        pl.BlockSpec((tile_n, H), lambda i, k, nnz: (i, 0)),        # h (f32, GRU hidden tile)
        pl.BlockSpec((H, 3 * H), lambda i, k, nnz: (0, 0)),         # fused W_conv@W_ih
        pl.BlockSpec((H, 3 * H), lambda i, k, nnz: (0, 0)),         # fused W_hh
        pl.BlockSpec((1, 3 * H), lambda i, k, nnz: (0, 0)),         # fused b_ih
        pl.BlockSpec((1, 3 * H), lambda i, k, nnz: (0, 0)),         # fused b_hh
    ]
    head_specs = [
        pl.BlockSpec((tile_n, H), lambda i, k, nnz: (i, 0)),        # h_in tile (residual)
        pl.BlockSpec((H, Cp), lambda i, k, nnz: (0, 0)),            # W_mlp
        pl.BlockSpec((1, Cp), lambda i, k, nnz: (0, 0)),            # b_mlp
    ]
    scratch = [pltpu.VMEM((tile_n, H), f32)]                        # aggregation accumulator

    # ---- nlayers x (GatedGraphConv + shared GRUCell); head fused into the last layer ----
    h_f, h_b = h0_f, h0_b
    out_p = None
    for layer in range(nlayers):
        fuse_head = (layer == nlayers - 1)
        kern = functools.partial(_layer_kernel, hpad=H, nclass=nclass, fuse_head=fuse_head)
        if not fuse_head:
            h_f, h_b = pl.pallas_call(
                kern,
                out_shape=(jax.ShapeDtypeStruct((n_pad, H), f32),
                           jax.ShapeDtypeStruct((n_pad, H), bf16)),
                grid_spec=pltpu.PrefetchScalarGridSpec(
                    num_scalar_prefetch=1, grid=(n_dst, n_src),
                    in_specs=base_specs,
                    out_specs=(pl.BlockSpec((tile_n, H), lambda i, k, nnz: (i, 0)),
                               pl.BlockSpec((tile_n, H), lambda i, k, nnz: (i, 0))),
                    scratch_shapes=scratch),
                compiler_params=cp_layer,
            )(nnz, adjp, h_b, h_f, w_comb[layer], w_hh, b_ih, b_hh)
        else:
            out_p = pl.pallas_call(
                kern,
                out_shape=jax.ShapeDtypeStruct((n_pad, Cp), f32),
                grid_spec=pltpu.PrefetchScalarGridSpec(
                    num_scalar_prefetch=1, grid=(n_dst, n_src),
                    in_specs=base_specs + head_specs,
                    out_specs=pl.BlockSpec((tile_n, Cp), lambda i, k, nnz: (i, 0)),
                    scratch_shapes=scratch),
                compiler_params=cp_layer,
            )(nnz, adjp, h_b, h_f, w_comb[layer], w_hh, b_ih, b_hh, h0_f, w_mlp, b_mlp)

    return out_p[:N, :nclass]


# --------------------------------------------------------------------------------------
# Pure-JAX reference (f32 throughout) for self-check
# --------------------------------------------------------------------------------------
def gated_gnn_reference(x, adj, params, *, nlayers: int):
    h = x @ params["w_emb"] + params["b_emb"]
    h_in = h
    for layer in range(nlayers):
        m = adj @ (h @ params["w_conv"][layer])
        i_r = m @ params["w_ih"][0] + params["b_ih"][0]
        i_z = m @ params["w_ih"][1] + params["b_ih"][1]
        i_n = m @ params["w_ih"][2] + params["b_ih"][2]
        h_r = h @ params["w_hh"][0] + params["b_hh"][0]
        h_z = h @ params["w_hh"][1] + params["b_hh"][1]
        h_n = h @ params["w_hh"][2] + params["b_hh"][2]
        r = jax.nn.sigmoid(i_r + h_r)
        z = jax.nn.sigmoid(i_z + h_z)
        n = jnp.tanh(i_n + r * h_n)
        h = (1.0 - z) * n + z * h
    h = h_in + h
    logits = h @ params["w_mlp"] + params["b_mlp"]
    return jax.nn.log_softmax(logits, axis=1)


def make_params(key, nfeat, nhid, nclass, nlayers):
    ks = jax.random.split(key, 11)
    scale = 0.1
    return {
        # stored pre-transposed: y = x @ W + b
        "w_emb": scale * jax.random.normal(ks[0], (nfeat, nhid), jnp.float32),
        "b_emb": scale * jax.random.normal(ks[1], (1, nhid), jnp.float32),
        "w_conv": scale * jax.random.normal(ks[2], (nlayers, nhid, nhid), jnp.float32),
        "w_ih": scale * jax.random.normal(ks[3], (3, nhid, nhid), jnp.float32),
        "w_hh": scale * jax.random.normal(ks[4], (3, nhid, nhid), jnp.float32),
        "b_ih": scale * jax.random.normal(ks[5], (3, 1, nhid), jnp.float32),
        "b_hh": scale * jax.random.normal(ks[6], (3, 1, nhid), jnp.float32),
        "w_mlp": scale * jax.random.normal(ks[7], (nhid, nclass), jnp.float32),
        "b_mlp": scale * jax.random.normal(ks[8], (1, nclass), jnp.float32),
    }


if __name__ == "__main__":
    # Small, deterministic problem.
    N, NFEAT, NHID, NCLASS, NLAYERS = 32, 16, 32, 8, 2
    NUM_EDGES = 64

    key = jax.random.PRNGKey(0)
    k_x, k_src, k_dst, k_w, k_p = jax.random.split(key, 5)

    x = jax.random.normal(k_x, (N, NFEAT), jnp.float32)

    # Random graph: edge_index [2, E], edge_weight [E]  (PyG convention src->dst).
    src = jax.random.randint(k_src, (NUM_EDGES,), 0, N)
    dst = jax.random.randint(k_dst, (NUM_EDGES,), 0, N)
    edge_weight = jax.random.uniform(k_w, (NUM_EDGES,), jnp.float32)

    # Dense weighted adjacency with A[dst, src] = edge_weight (duplicates summed),
    # so aggr='add' message passing becomes a matmul.
    adj = jnp.zeros((N, N), jnp.float32).at[dst, src].add(edge_weight)

    params = make_params(k_p, NFEAT, NHID, NCLASS, NLAYERS)

    out = gated_gnn_forward(x, adj, params, nlayers=NLAYERS)
    out = jax.block_until_ready(out)

    ref = gated_gnn_reference(x, adj, params, nlayers=NLAYERS)
    assert out.shape == (N, NCLASS)
    # Tolerance loosened vs. the f32 reference because MXU inputs are bf16 (f32 accumulation)
    # and W_conv@W_ih is pre-fused before the bf16 cast.
    assert jnp.allclose(out, ref, atol=5e-2, rtol=5e-2), "Pallas kernel mismatch vs reference"

    print("KERNEL_OK")
</pallas_src>

<mosaic_0001>
module attributes {stable_mosaic.version = 11 : i64} {
  func.func @_embed_kernel(%arg0: i32, %arg1: memref<128x128xbf16, #tpu.memory_space<vmem>>, %arg2: memref<128x128xbf16, #tpu.memory_space<vmem>>, %arg3: memref<1x128xf32, #tpu.memory_space<vmem>>, %arg4: memref<128x128xf32, #tpu.memory_space<vmem>>, %arg5: memref<128x128xbf16, #tpu.memory_space<vmem>>) attributes {dimension_semantics = [#tpu.dimension_semantics<parallel>], iteration_bounds = array<i64: 1>, scalar_prefetch = 0 : i64, scratch_operands = 0 : i64, tpu.core_type = #tpu.core_type<tc>, window_params = [{transform_indices = @transform_0, window_bounds = array<i64: 128, 128>}, {pipeline_mode = #tpu.pipeline_mode<synchronous>, transform_indices = @transform_1, window_bounds = array<i64: 128, 128>}, {pipeline_mode = #tpu.pipeline_mode<synchronous>, transform_indices = @transform_2, window_bounds = array<i64: 1, 128>}, {transform_indices = @transform_3, window_bounds = array<i64: 128, 128>}, {transform_indices = @transform_4, window_bounds = array<i64: 128, 128>}]} {
    %c0 = arith.constant 0 : index
    %c0_0 = arith.constant 0 : index
    %0 = vector.load %arg1[%c0, %c0_0] : memref<128x128xbf16, #tpu.memory_space<vmem>>, vector<128x128xbf16>
    %c0_1 = arith.constant 0 : index
    %c0_2 = arith.constant 0 : index
    %1 = vector.load %arg2[%c0_1, %c0_2] : memref<128x128xbf16, #tpu.memory_space<vmem>>, vector<128x128xbf16>
    %cst = arith.constant dense<0.000000e+00> : vector<128x128xf32>
    %2 = tpu.matmul %0, %1, %cst {dimension_numbers = #tpu.dot_dimension_numbers<[1], [0], [0], [1], [0, 0, 1, 1], [], []>} : vector<128x128xbf16>, vector<128x128xbf16>, vector<128x128xf32> -> vector<128x128xf32>
    %c0_3 = arith.constant 0 : index
    %c0_4 = arith.constant 0 : index
    %3 = vector.load %arg3[%c0_3, %c0_4] : memref<1x128xf32, #tpu.memory_space<vmem>>, vector<1x128xf32>
    %4 = vector.broadcast %3 : vector<1x128xf32> to vector<128x128xf32>
    %5 = arith.addf %2, %4 : vector<128x128xf32>
    %c0_5 = arith.constant 0 : index
    %c0_6 = arith.constant 0 : index
    %6 = vector.load %arg4[%c0_5, %c0_6] : memref<128x128xf32, #tpu.memory_space<vmem>>, vector<128x128xf32>
    tpu.vector_store %arg4[%c0_5, %c0_6], %5 {strides = array<i32>} : memref<128x128xf32, #tpu.memory_space<vmem>>, vector<128x128xf32>,
    %7 = arith.truncf %5 : vector<128x128xf32> to vector<128x128xbf16>
    %c0_7 = arith.constant 0 : index
    %c0_8 = arith.constant 0 : index
    %8 = vector.load %arg5[%c0_7, %c0_8] : memref<128x128xbf16, #tpu.memory_space<vmem>>, vector<128x128xbf16>
    tpu.vector_store %arg5[%c0_7, %c0_8], %7 {strides = array<i32>} : memref<128x128xbf16, #tpu.memory_space<vmem>>, vector<128x128xbf16>,
    return
  }
  func.func @transform_0(%arg0: i32) -> (i32, i32) {
    %c0_i32 = arith.constant 0 : i32
    %c0_i32_0 = arith.constant 0 : i32
    return %arg0, %c0_i32 : i32, i32
  }
  func.func @transform_1(%arg0: i32) -> (i32, i32) {
    %c0_i32 = arith.constant 0 : i32
    %c0_i32_0 = arith.constant 0 : i32
    %c0_i32_1 = arith.constant 0 : i32
    return %c0_i32, %c0_i32_0 : i32, i32
  }
  func.func @transform_2(%arg0: i32) -> (i32, i32) {
    %c0_i32 = arith.constant 0 : i32
    %c0_i32_0 = arith.constant 0 : i32
    %c0_i32_1 = arith.constant 0 : i32
    return %c0_i32, %c0_i32_0 : i32, i32
  }
  func.func @transform_3(%arg0: i32) -> (i32, i32) {
    %c0_i32 = arith.constant 0 : i32
    %c0_i32_0 = arith.constant 0 : i32
    return %arg0, %c0_i32 : i32, i32
  }
  func.func @transform_4(%arg0: i32) -> (i32, i32) {
    %c0_i32 = arith.constant 0 : i32
    %c0_i32_0 = arith.constant 0 : i32
    return %arg0, %c0_i32 : i32, i32
  }
}

</mosaic_0001>

<llo_original>
// kernel: tpu_custom_call.1
$region0: #{tpu_custom_call.1}
  #allocation0 [shape = 'u32[]', space=smem, size = 0x4, offset = 0x4, fixed_abs, tag = 'smem constant byte address 0x4 - core index']
  #allocation1 [shape = 'u32[72,128]{1,0:T(1,128)}', space=vmem, size = 0x9000, scoped, tag = 'internal scratch']
  %s0 = inlined_call_operand.hbm [shape: bf16[128,128], index: 0, kind: input, shape index: {}]
  %s1 = inlined_call_operand.hbm [shape: bf16[128,128], index: 1, kind: input, shape index: {}]
  %s2 = inlined_call_operand.vmem [shape: f32[1,128], index: 2, kind: input, shape index: {}]
  %s3 = inlined_call_operand.hbm [shape: f32[128,128], index: 3, kind: output, shape index: {0}]
  %s4 = inlined_call_operand.hbm [shape: bf16[128,128], index: 4, kind: output, shape index: {1}]
  %5 = xla_tuple %s3, %s4
  %s6 = sld [smem:[#allocation0]]
  $region38: #{tpu_custom_call.1} parent=0
    _
  %s8 = ssub.s32 1, %s6
  %s9 = scalar_select 0, %s8, %s6
  $region1: #{tpu_custom_call.1} parent=0
    #allocation2 [shape = 'u8[32768]{0}', space=vmem, size = 0x8000, scoped, tag = 'input window, operand 0, single buffered']
    #allocation3 [shape = 's32[1]{0}', space=sflag, size = 0x4, scoped, tag = 'scoped memory for tpu_custom_call.1']
    #allocation4 [shape = 's32[1]{0}', space=sflag, size = 0x4, scoped, tag = 'scoped memory for tpu_custom_call.1']
    #allocation5 [shape = 'u8[32768]{0}', space=vmem, size = 0x8000, scoped, tag = 'input window, operand 1, single buffered']
    #allocation6 [shape = 's32[1]{0}', space=sflag, size = 0x4, scoped, tag = 'scoped memory for tpu_custom_call.1']
    #allocation7 [shape = 'u8[65536]{0}', space=vmem, size = 0x10000, scoped, tag = 'output window, operand 0, single buffered']
    #allocation8 [shape = 'u8[32768]{0}', space=vmem, size = 0x8000, scoped, tag = 'output window, operand 1, single buffered']
    #allocation9 [shape = 's32[1]{0}', space=sflag, size = 0x4, scoped, tag = 'scoped memory for tpu_custom_call.1']
    %10 = vsyncpa [#allocation3], 0
    %11 = vsyncpa [#allocation6], 0
    %12 = vsyncpa [#allocation4], 0
    %13 = vsyncpa [#allocation9], 0
    // Predicated region
    $region2: #{tpu_custom_call.1} parent=1 // pred_check
      _
    $region3: #{tpu_custom_call.1} parent=1 // pred_check_branch
      %15 = sbr.rel (0) target = $region5
    $region4: #{tpu_custom_call.1} parent=1 // pred_region
      %17 = vsyncadd [#allocation3], 0
      %s18 = sshll.u32 %s0, 4
      %s19 = int_to_ptr.hbm [resolvable:$true] %s18
      %s20 = sshll.u32 [#allocation2], 4
      %s21 = int_to_ptr.vmem [resolvable:$true] %s20
      %26 = dma.hbm_to_vmem [thread:$0]  %s19, 1024, %s21, [#allocation3], 64, 64, 4
    $region5: #{tpu_custom_call.1} parent=1 // pred_fallthru
      _
    // Predicated region
    $region6: #{tpu_custom_call.1} parent=1 // pred_check
      _
    $region7: #{tpu_custom_call.1} parent=1 // pred_check_branch
      %28 = sbr.rel (0) target = $region9
    $region8: #{tpu_custom_call.1} parent=1 // pred_region
      %30 = vsyncadd [#allocation6], 0
      %s31 = sshll.u32 %s1, 4
      %s32 = int_to_ptr.hbm [resolvable:$true] %s31
      %s33 = sshll.u32 [#allocation5], 4
      %s34 = int_to_ptr.vmem [resolvable:$true] %s33
      %39 = dma.hbm_to_vmem [thread:$0]  %s32, 1024, %s34, [#allocation6], 64, 64, 4
    $region9: #{tpu_custom_call.1} parent=1 // pred_fallthru
      _
    // Predicated region
    $region10: #{tpu_custom_call.1} parent=1 // pred_check
      _
    $region11: #{tpu_custom_call.1} parent=1 // pred_check_branch
      %41 = sbr.rel (0) target = $region13
    $region12: #{tpu_custom_call.1} parent=1 // pred_region
      _
    $region13: #{tpu_custom_call.1} parent=1 // pred_fallthru
      _
    // Predicated region
    $region14: #{tpu_custom_call.1} parent=1 // pred_check
      _
    $region15: #{tpu_custom_call.1} parent=1 // pred_check_branch
      %43 = sbr.rel (0) target = $region17
    $region16: #{tpu_custom_call.1} parent=1 // pred_region
      %45 = dma.done [#allocation3], 1024
    $region17: #{tpu_custom_call.1} parent=1 // pred_fallthru
      _
    // Predicated region
    $region18: #{tpu_custom_call.1} parent=1 // pred_check
      _
    $region19: #{tpu_custom_call.1} parent=1 // pred_check_branch
      %47 = sbr.rel (0) target = $region21
    $region20: #{tpu_custom_call.1} parent=1 // pred_region
      %49 = dma.done [#allocation6], 1024
    $region21: #{tpu_custom_call.1} parent=1 // pred_fallthru
      _
    %v50 = vld [vmem:[#allocation2] sm:$0xf]
    %v51 = vld [vmem:[#allocation2 + $0x4] sm:$0xf]
    %v52 = vld [vmem:[#allocation2 + $0x8] sm:$0xf]
    %v53 = vld [vmem:[#allocation2 + $0xc] sm:$0xf]
    %v54 = vld [vmem:[#allocation2 + $0x10] sm:$0xf]
    %v55 = vld [vmem:[#allocation2 + $0x14] sm:$0xf]
    %v56 = vld [vmem:[#allocation2 + $0x18] sm:$0xf]
    %v57 = vld [vmem:[#allocation2 + $0x1c] sm:$0xf]
    %v58 = vld [vmem:[#allocation2 + $0x20] sm:$0xf]
    %v59 = vld [vmem:[#allocation2 + $0x24] sm:$0xf]
    %v60 = vld [vmem:[#allocation2 + $0x28] sm:$0xf]
    %v61 = vld [vmem:[#allocation2 + $0x2c] sm:$0xf]
    %v62 = vld [vmem:[#allocation2 + $0x30] sm:$0xf]
    %v63 = vld [vmem:[#allocation2 + $0x34] sm:$0xf]
    %v64 = vld [vmem:[#allocation2 + $0x38] sm:$0xf]
    %v65 = vld [vmem:[#allocation2 + $0x3c] sm:$0xf]
    %v66 = vld [vmem:[#allocation5] sm:$0xf]
    %v67 = vld [vmem:[#allocation5 + $0x4] sm:$0xf]
    %v68 = vld [vmem:[#allocation5 + $0x8] sm:$0xf]
    %v69 = vld [vmem:[#allocation5 + $0xc] sm:$0xf]
    %v70 = vld [vmem:[#allocation5 + $0x10] sm:$0xf]
    %v71 = vld [vmem:[#allocation5 + $0x14] sm:$0xf]
    %v72 = vld [vmem:[#allocation5 + $0x18] sm:$0xf]
    %v73 = vld [vmem:[#allocation5 + $0x1c] sm:$0xf]
    %v74 = vld [vmem:[#allocation5 + $0x20] sm:$0xf]
    %v75 = vld [vmem:[#allocation5 + $0x24] sm:$0xf]
    %v76 = vld [vmem:[#allocation5 + $0x28] sm:$0xf]
    %v77 = vld [vmem:[#allocation5 + $0x2c] sm:$0xf]
    %v78 = vld [vmem:[#allocation5 + $0x30] sm:$0xf]
    %v79 = vld [vmem:[#allocation5 + $0x34] sm:$0xf]
    %v80 = vld [vmem:[#allocation5 + $0x38] sm:$0xf]
    %v81 = vld [vmem:[#allocation5 + $0x3c] sm:$0xf]
    %v82 = vld [vmem:[%s2] sm:$0x1]
    %v84 = vperm.slane %v82, 0
    %v102 = vunpack.c.l.b16 %v50
    %v103 = vunpack.c.l.b16 %v51
    %v104 = vunpack.c.l.b16 %v52
    %v105 = vunpack.c.l.b16 %v53
    %v106 = vunpack.c.l.b16 %v54
    %v107 = vunpack.c.l.b16 %v55
    %v108 = vunpack.c.l.b16 %v56
    %v109 = vunpack.c.l.b16 %v57
    %v110 = vunpack.c.l.b16 %v58
    %v111 = vunpack.c.l.b16 %v59
    %v112 = vunpack.c.l.b16 %v60
    %v113 = vunpack.c.l.b16 %v61
    %v114 = vunpack.c.l.b16 %v62
    %v115 = vunpack.c.l.b16 %v63
    %v116 = vunpack.c.l.b16 %v64
    %v117 = vunpack.c.l.b16 %v65
    %v118 = vpack.c.b16 %v103, %v102
    %v119 = vpack.c.b16 %v105, %v104
    %v120 = vpack.c.b16 %v107, %v106
    %v121 = vpack.c.b16 %v109, %v108
    %v122 = vpack.c.b16 %v111, %v110
    %v123 = vpack.c.b16 %v113, %v112
    %v124 = vpack.c.b16 %v115, %v114
    %v125 = vpack.c.b16 %v117, %v116
    %v150 = vunpack.c.l.b16 %v66
    %v151 = vunpack.c.l.b16 %v67
    %v152 = vunpack.c.l.b16 %v68
    %v153 = vunpack.c.l.b16 %v69
    %v154 = vunpack.c.l.b16 %v70
    %v155 = vunpack.c.l.b16 %v71
    %v156 = vunpack.c.l.b16 %v72
    %v157 = vunpack.c.l.b16 %v73
    %v158 = vunpack.c.l.b16 %v74
    %v159 = vunpack.c.l.b16 %v75
    %v160 = vunpack.c.l.b16 %v76
    %v161 = vunpack.c.l.b16 %v77
    %v162 = vunpack.c.l.b16 %v78
    %v163 = vunpack.c.l.b16 %v79
    %v164 = vunpack.c.l.b16 %v80
    %v165 = vunpack.c.l.b16 %v81
    %v166 = vpack.c.b16 %v151, %v150
    %v167 = vpack.c.b16 %v153, %v152
    %v168 = vpack.c.b16 %v155, %v154
    %v169 = vpack.c.b16 %v157, %v156
    %v170 = vpack.c.b16 %v159, %v158
    %v171 = vpack.c.b16 %v161, %v160
    %v172 = vpack.c.b16 %v163, %v162
    %v173 = vpack.c.b16 %v165, %v164
    %182 = vmatpush.bf16.msra.mxu0 %v173
    %183 = vmatpush.bf16.msra.mxu0 %v172
    %184 = vmatpush.bf16.msra.mxu0 %v171
    %185 = vmatpush.bf16.msra.mxu0 %v170
    %186 = vmatpush.bf16.msra.mxu0 %v169
    %187 = vmatpush.bf16.msra.mxu0 %v168
    %188 = vmatpush.bf16.msra.mxu0 %v167
    %189 = vmatpush.bf16.msra.mxu0 %v166
    %190 = vmatmul.bf16.gmra.mxu0 %v118
    %v191 = vpop.f32.mrf.mxu0
    %v192 = vadd.f32 %v84, %v191
    %v193 = vpop.f32.mrf.mxu0
    %v194 = vadd.f32 %v84, %v193
    %195 = vmatmul.bf16.gmra.mxu0 %v119
    %v196 = vpop.f32.mrf.mxu0
    %v197 = vadd.f32 %v84, %v196
    %v198 = vpop.f32.mrf.mxu0
    %v199 = vadd.f32 %v84, %v198
    %200 = vmatmul.bf16.gmra.mxu0 %v120
    %v201 = vpop.f32.mrf.mxu0
    %v202 = vadd.f32 %v84, %v201
    %v203 = vpop.f32.mrf.mxu0
    %v204 = vadd.f32 %v84, %v203
    %205 = vmatmul.bf16.gmra.mxu0 %v121
    %v206 = vpop.f32.mrf.mxu0
    %v207 = vadd.f32 %v84, %v206
    %v208 = vpop.f32.mrf.mxu0
    %v209 = vadd.f32 %v84, %v208
    %210 = vmatmul.bf16.gmra.mxu0 %v122
    %v211 = vpop.f32.mrf.mxu0
    %v212 = vadd.f32 %v84, %v211
    %v213 = vpop.f32.mrf.mxu0
    %v214 = vadd.f32 %v84, %v213
    %215 = vmatmul.bf16.gmra.mxu0 %v123
    %v216 = vpop.f32.mrf.mxu0
    %v217 = vadd.f32 %v84, %v216
    %v218 = vpop.f32.mrf.mxu0
    %v219 = vadd.f32 %v84, %v218
    %220 = vmatmul.bf16.gmra.mxu0 %v124
    %v221 = vpop.f32.mrf.mxu0
    %v222 = vadd.f32 %v84, %v221
    %v223 = vpop.f32.mrf.mxu0
    %v224 = vadd.f32 %v84, %v223
    %225 = vmatmul.bf16.gmra.mxu0 %v125
    %v226 = vpop.f32.mrf.mxu0
    %v227 = vadd.f32 %v84, %v226
    %v228 = vpop.f32.mrf.mxu0
    %v229 = vadd.f32 %v84, %v228
    %230 = vdwg.mxu0
    %231 = vst [vmem:[#allocation7] sm:$0xff] %v192
    %232 = vst [vmem:[#allocation7 + $0x8] sm:$0xff] %v194
    %233 = vst [vmem:[#allocation7 + $0x10] sm:$0xff] %v197
    %234 = vst [vmem:[#allocation7 + $0x18] sm:$0xff] %v199
    %235 = vst [vmem:[#allocation7 + $0x20] sm:$0xff] %v202
    %236 = vst [vmem:[#allocation7 + $0x28] sm:$0xff] %v204
    %237 = vst [vmem:[#allocation7 + $0x30] sm:$0xff] %v207
    %238 = vst [vmem:[#allocation7 + $0x38] sm:$0xff] %v209
    %239 = vst [vmem:[#allocation7 + $0x40] sm:$0xff] %v212
    %240 = vst [vmem:[#allocation7 + $0x48] sm:$0xff] %v214
    %241 = vst [vmem:[#allocation7 + $0x50] sm:$0xff] %v217
    %242 = vst [vmem:[#allocation7 + $0x58] sm:$0xff] %v219
    %243 = vst [vmem:[#allocation7 + $0x60] sm:$0xff] %v222
    %244 = vst [vmem:[#allocation7 + $0x68] sm:$0xff] %v224
    %245 = vst [vmem:[#allocation7 + $0x70] sm:$0xff] %v227
    %246 = vst [vmem:[#allocation7 + $0x78] sm:$0xff] %v229
    %v247 = vpack.c.bf16 %v192, %v192
    %v248 = vpack.c.bf16 %v194, %v194
    %v249 = vpack.c.bf16 %v197, %v197
    %v250 = vpack.c.bf16 %v199, %v199
    %v251 = vpack.c.bf16 %v202, %v202
    %v252 = vpack.c.bf16 %v204, %v204
    %v253 = vpack.c.bf16 %v207, %v207
    %v254 = vpack.c.bf16 %v209, %v209
    %v255 = vpack.c.bf16 %v212, %v212
    %v256 = vpack.c.bf16 %v214, %v214
    %v257 = vpack.c.bf16 %v217, %v217
    %v258 = vpack.c.bf16 %v219, %v219
    %v259 = vpack.c.bf16 %v222, %v222
    %v260 = vpack.c.bf16 %v224, %v224
    %v261 = vpack.c.bf16 %v227, %v227
    %v262 = vpack.c.bf16 %v229, %v229
    %263 = vst [vmem:[#allocation8] sm:$0xf] %v247
    %264 = vst [vmem:[#allocation8 + $0x4] sm:$0xf] %v248
    %265 = vst [vmem:[#allocation8 + $0x8] sm:$0xf] %v249
    %266 = vst [vmem:[#allocation8 + $0xc] sm:$0xf] %v250
    %267 = vst [vmem:[#allocation8 + $0x10] sm:$0xf] %v251
    %268 = vst [vmem:[#allocation8 + $0x14] sm:$0xf] %v252
    %269 = vst [vmem:[#allocation8 + $0x18] sm:$0xf] %v253
    %270 = vst [vmem:[#allocation8 + $0x1c] sm:$0xf] %v254
    %271 = vst [vmem:[#allocation8 + $0x20] sm:$0xf] %v255
    %272 = vst [vmem:[#allocation8 + $0x24] sm:$0xf] %v256
    %273 = vst [vmem:[#allocation8 + $0x28] sm:$0xf] %v257
    %274 = vst [vmem:[#allocation8 + $0x2c] sm:$0xf] %v258
    %275 = vst [vmem:[#allocation8 + $0x30] sm:$0xf] %v259
    %276 = vst [vmem:[#allocation8 + $0x34] sm:$0xf] %v260
    %277 = vst [vmem:[#allocation8 + $0x38] sm:$0xf] %v261
    %278 = vst [vmem:[#allocation8 + $0x3c] sm:$0xf] %v262
    // Predicated region
    $region22: #{tpu_custom_call.1} parent=1 // pred_check
      _
    $region23: #{tpu_custom_call.1} parent=1 // pred_check_branch
      %280 = sbr.rel (0) target = $region25
    $region24: #{tpu_custom_call.1} parent=1 // pred_region
      %282 = vsyncadd [#allocation4], 0
      %s283 = sshll.u32 [#allocation7], 4
      %s284 = int_to_ptr.vmem [resolvable:$true] %s283
      %s285 = sshll.u32 %s3, 4
      %s286 = int_to_ptr.hbm [resolvable:$true] %s285
      %291 = dma.vmem_to_hbm [thread:$0]  %s284, 2048, %s286, [#allocation4], 128, 128, 8
    $region25: #{tpu_custom_call.1} parent=1 // pred_fallthru
      _
    // Predicated region
    $region26: #{tpu_custom_call.1} parent=1 // pred_check
      _
    $region27: #{tpu_custom_call.1} parent=1 // pred_check_branch
      %293 = sbr.rel (0) target = $region29
    $region28: #{tpu_custom_call.1} parent=1 // pred_region
      %295 = vsyncadd [#allocation9], 0
      %s296 = sshll.u32 [#allocation8], 4
      %s297 = int_to_ptr.vmem [resolvable:$true] %s296
      %s298 = sshll.u32 %s4, 4
      %s299 = int_to_ptr.hbm [resolvable:$true] %s298
      %304 = dma.vmem_to_hbm [thread:$0]  %s297, 1024, %s299, [#allocation9], 64, 64, 4
    $region29: #{tpu_custom_call.1} parent=1 // pred_fallthru
      _
    // Predicated region
    $region30: #{tpu_custom_call.1} parent=1 // pred_check
      _
    $region31: #{tpu_custom_call.1} parent=1 // pred_check_branch
      %306 = sbr.rel (0) target = $region33
    $region32: #{tpu_custom_call.1} parent=1 // pred_region
      %308 = dma.done [#allocation4], 2048
    $region33: #{tpu_custom_call.1} parent=1 // pred_fallthru
      _
    // Predicated region
    $region34: #{tpu_custom_call.1} parent=1 // pred_check
      _
    $region35: #{tpu_custom_call.1} parent=1 // pred_check_branch
      %310 = sbr.rel (0) target = $region37
    $region36: #{tpu_custom_call.1} parent=1 // pred_region
      %312 = dma.done [#allocation9], 1024
    $region37: #{tpu_custom_call.1} parent=1 // pred_fallthru
      _
    %313 = vsyncpa [#allocation3], 1
    %314 = vsyncpa [#allocation6], 1
    %315 = vsyncpa [#allocation4], 1
    %316 = vsyncpa [#allocation9], 1

</llo_original>
